<compile_context>
chip_gen: v5e
topology: v5e:2x2
jax: 0.10.0
libtpu: 0.0.40
codegen_flags: <defaults>
</compile_context>

<pallas_src>
import functools

import jax
import jax.numpy as jnp
from jax.experimental import pallas as pl
from jax.experimental.pallas import tpu as pltpu


SUBLANE = 8
_MIN_GRID_STEPS = 4   # >= 2 grid steps per v7x TensorCore


def _vmem_budgets():
    """(vmem_limit_bytes, per-step working-set budget) -- generation aware."""
    cap = 64 * 1024 * 1024
    try:
        cap = int(pltpu.get_tpu_info().vmem_capacity_bytes)
    except Exception:
        pass
    if cap >= 100 * 1024 * 1024:                       # v5e / v6e: 128 MiB VMEM
        return 48 * 1024 * 1024, 40 * 1024 * 1024
    return 36 * 1024 * 1024, 16 * 1024 * 1024          # v7x: 64 MiB per TensorCore


def _tile_bytes(tho, wo, cin3, cout):
    """Double-buffered VMEM working set of one grid step (tho output rows)."""
    m = tho * wo
    even = (tho + 1) * wo * cin3 * 2                   # bf16 even-row slab block
    odd = m * cin3 * 2                                 # bf16 odd-row slab block
    wgt = 3 * cin3 * cout * 2                          # bf16 weights (constant index
                                                       # map, still double-buffered)
    vecs = 2 * cout * 4                                # f32 scale + bias
    out = m * cout * 2                                 # bf16 output block
    acc = m * cout * 4 + 2 * m * cin3 * 2              # f32 accumulator + lhs temps
    return 2 * (even + odd + wgt + vecs + out) + acc


def _choose_row_tiling(n, ho, wo, cin3, cout, budget):
    """Pick T (number of row tiles per image, a divisor of Ho) and tho = Ho // T."""
    divisors = [d for d in range(1, ho + 1) if ho % d == 0]

    def valid(t):
        # Output block is (1, tho*Wo, Cout); when it is not the full Ho*Wo extent,
        # its second-to-last dim must be a sublane multiple.
        return t == 1 or ((ho // t) * wo) % SUBLANE == 0

    chosen = None
    for t in divisors:                                 # ascending -> largest tiles first
        if valid(t) and _tile_bytes(ho // t, wo, cin3, cout) <= budget:
            chosen = t
            break
    if chosen is None:
        chosen = 1                                     # weights alone exceed the budget;
                                                       # rely on vmem_limit headroom.
    for t in divisors:                                 # ensure enough grid steps to feed
        if t >= chosen and valid(t) and n * t >= _MIN_GRID_STEPS:   # both v7x cores
            chosen = t
            break
    return chosen, ho // chosen


def _conv_bn_kernel(even_ref, odd_ref, w_ref, scale_ref, bias_ref, o_ref, *, m, wo):
    # even_ref: (1, 1, (tho+1)*Wo, 3*Cin) bf16  -- padded rows 2r,   kx taps on channels
    # odd_ref:  (1, 1,  tho   *Wo, 3*Cin) bf16  -- padded rows 2r+1, kx taps on channels
    # w_ref:    (3, 3*Cin, Cout)  bf16          -- one (3*Cin, Cout) matrix per ky
    # scale_ref/bias_ref: (1, Cout) f32         -- BN scale / folded conv-bias + BN shift
    # o_ref:    (1, m, Cout) bf16               -- flat (tho*Wo) NHWC output rows
    acc = jnp.dot(even_ref[0, 0, 0:m, :], w_ref[0],
                  preferred_element_type=jnp.float32)              # ky = 0
    acc += jnp.dot(odd_ref[0, 0, 0:m, :], w_ref[1],
                   preferred_element_type=jnp.float32)             # ky = 1
    acc += jnp.dot(even_ref[0, 0, wo:wo + m, :], w_ref[2],
                   preferred_element_type=jnp.float32)             # ky = 2
    # BN scale applied on the f32 accumulator (numerically safer than folding it
    # into bf16 weights); the VPU has ample slack in this HBM/MXU-bound kernel.
    o_ref[0, :, :] = (acc * scale_ref[...] + bias_ref[...]).astype(o_ref.dtype)


def init_downsample_params(key, in_dim, out_dim):
    kw, kb = jax.random.split(key)
    fan_in = in_dim * 3 * 3
    bound = 1.0 / (fan_in ** 0.5)
    conv_w = jax.random.uniform(kw, (out_dim, in_dim, 3, 3),
                                jnp.float32, -bound, bound)   # OIHW (PyTorch)
    conv_b = jax.random.uniform(kb, (out_dim,), jnp.float32, -bound, bound)
    bn_gamma = jnp.ones((out_dim,), jnp.float32)
    bn_beta = jnp.zeros((out_dim,), jnp.float32)
    bn_mean = jnp.zeros((out_dim,), jnp.float32)
    bn_var = jnp.ones((out_dim,), jnp.float32)
    return dict(conv_w=conv_w, conv_b=conv_b, bn_gamma=bn_gamma,
                bn_beta=bn_beta, bn_mean=bn_mean, bn_var=bn_var)


def downsample_forward(x_nchw, params, eps=1e-5, compute_dtype=jnp.bfloat16,
                       channels_last=False):
    # TODO(synk): training-mode BatchNorm (batch statistics + running-stat updates)
    # is not implemented; this matches PyTorch eval() semantics.
    N, Cin, H, W = x_nchw.shape
    conv_w = params["conv_w"]                          # (Cout, Cin, 3, 3)
    Cout = conv_w.shape[0]
    Ho = (H + 2 - 3) // 2 + 1
    Wo = (W + 2 - 3) // 2 + 1

    # ---- fold BatchNorm (inference / running stats) + conv bias ----
    scale = params["bn_gamma"] / jnp.sqrt(params["bn_var"] + eps)            # (Cout,)
    bias = (params["conv_b"] - params["bn_mean"]) * scale + params["bn_beta"]
    scale2d = scale.reshape(1, Cout).astype(jnp.float32)
    bias2d = bias.reshape(1, Cout).astype(jnp.float32)

    # Weights: OIHW -> (ky, kx, Cin, Cout) -> (3, 3*Cin, Cout), bf16.  The BN scale is
    # kept in f32 and applied on the accumulator inside the kernel.
    w3 = jnp.transpose(conv_w, (2, 3, 1, 0)).reshape(3, 3 * Cin, Cout)
    w3 = w3.astype(compute_dtype)

    # ---- layout plumbing (one XLA copy pass, ~1.5x the input in bf16) ----
    # NCHW -> NHWC, pad, and build the two kernel-row-parity slabs with the three
    # kx taps gathered onto the channel axis.  No 9x im2col array is materialized.
    x = jnp.transpose(x_nchw, (0, 2, 3, 1)).astype(compute_dtype)            # NHWC
    xp = jnp.pad(x, ((0, 0), (1, 1), (1, 1), (0, 0)))
    xe = xp[:, 0:2 * Ho + 1:2]                         # even padded rows: Ho+1 of them
    xo = xp[:, 1:2 * Ho:2]                             # odd padded rows:  Ho of them

    def taps(rows):
        return jnp.concatenate(
            [rows[:, :, kx:kx + 2 * Wo:2, :] for kx in range(3)], axis=-1)

    even = taps(xe)                                    # (N, Ho+1, Wo, 3*Cin)
    odd = taps(xo)                                     # (N, Ho,   Wo, 3*Cin)

    cin3 = 3 * Cin
    vmem_limit, budget = _vmem_budgets()
    T, tho = _choose_row_tiling(N, Ho, Wo, cin3, Cout, budget)
    m = tho * Wo

    # Row-tile the slabs.  The odd slab partitions Ho exactly (free reshape); the even
    # slab needs a one-row halo per tile (duplicated here, ~1/tho extra bytes).
    odd_t = odd.reshape(N, T, m, cin3)
    even_main = even[:, :Ho].reshape(N, T, tho, Wo, cin3)
    even_halo = even[:, tho:T * tho + 1:tho][:, :, None]          # (N, T, 1, Wo, 3Cin)
    even_t = jnp.concatenate([even_main, even_halo], axis=2).reshape(
        N, T, (tho + 1) * Wo, cin3)

    cost = pl.CostEstimate(
        flops=2 * N * Ho * Wo * 9 * Cin * Cout,
        transcendentals=0,
        bytes_accessed=(even_t.size + odd_t.size + w3.size) * 2
        + (scale2d.size + bias2d.size) * 4 + N * Ho * Wo * Cout * 2,
    )

    kernel = functools.partial(_conv_bn_kernel, m=m, wo=Wo)
    out_flat = pl.pallas_call(
        kernel,
        out_shape=jax.ShapeDtypeStruct((N, Ho * Wo, Cout), compute_dtype),
        grid=(N, T),
        in_specs=[
            # NOTE: if profiling shows exposed input DMA, raise these two to
            # pipeline_mode=pl.Buffered(3) (and account for it in _tile_bytes).
            pl.BlockSpec((1, 1, (tho + 1) * Wo, cin3), lambda n, t: (n, t, 0, 0)),
            pl.BlockSpec((1, 1, m, cin3), lambda n, t: (n, t, 0, 0)),
            pl.BlockSpec((3, cin3, Cout), lambda n, t: (0, 0, 0)),   # resident weights
            pl.BlockSpec((1, Cout), lambda n, t: (0, 0)),            # resident scale
            pl.BlockSpec((1, Cout), lambda n, t: (0, 0)),            # resident bias
        ],
        out_specs=pl.BlockSpec((1, m, Cout), lambda n, t: (n, t, 0)),
        compiler_params=pltpu.CompilerParams(
            dimension_semantics=("parallel", "parallel"),
            vmem_limit_bytes=vmem_limit,
        ),
        cost_estimate=cost,
    )(even_t, odd_t, w3, scale2d, bias2d)

    out_nhwc = out_flat.reshape(N, Ho, Wo, Cout)       # free (contiguous) reshape
    if channels_last:
        return out_nhwc                                # NHWC: no extra output pass
    return jnp.transpose(out_nhwc, (0, 3, 1, 2))       # PyTorch NCHW convention


def _reference(x_nchw, params, eps=1e-5):
    y = jax.lax.conv_general_dilated(
        x_nchw.astype(jnp.float32), params["conv_w"],
        window_strides=(2, 2), padding=((1, 1), (1, 1)),
        dimension_numbers=("NCHW", "OIHW", "NCHW"))
    y = y + params["conv_b"].reshape(1, -1, 1, 1)
    scale = params["bn_gamma"] / jnp.sqrt(params["bn_var"] + eps)
    y = (y - params["bn_mean"].reshape(1, -1, 1, 1)) * scale.reshape(1, -1, 1, 1)
    return y + params["bn_beta"].reshape(1, -1, 1, 1)


if __name__ == "__main__":
    key = jax.random.PRNGKey(0)
    k_x, k_p = jax.random.split(key)

    N, Cin, H, W = 2, 4, 16, 16
    Cout = 32
    x = jax.random.normal(k_x, (N, Cin, H, W), jnp.float32)
    params = init_downsample_params(k_p, Cin, Cout)

    fwd = jax.jit(downsample_forward)
    out = jax.block_until_ready(fwd(x, params))

    ref = jax.block_until_ready(_reference(x, params))
    assert out.shape == (N, Cout, H // 2, W // 2), out.shape
    # bf16 inputs/weights/output with f32 MXU accumulation and f32 BN scale in the
    # epilogue -> modest tolerance vs the f32 reference.
    out_f32 = out.astype(jnp.float32)
    err = float(jnp.max(jnp.abs(out_f32 - ref)))
    assert jnp.allclose(out_f32, ref, atol=4e-2, rtol=4e-2), (
        f"mismatch vs reference conv, max abs err {err}")

    print("KERNEL_OK")
</pallas_src>

<mosaic_0001>
module attributes {stable_mosaic.version = 11 : i64} {
  func.func @_conv_bn_kernel(%arg0: i32, %arg1: i32, %arg2: memref<1x1x40x12xbf16, #tpu.memory_space<vmem>>, %arg3: memref<1x1x32x12xbf16, #tpu.memory_space<vmem>>, %arg4: memref<3x12x32xbf16, #tpu.memory_space<vmem>>, %arg5: memref<1x32xf32, #tpu.memory_space<vmem>>, %arg6: memref<1x32xf32, #tpu.memory_space<vmem>>, %arg7: memref<1x32x32xbf16, #tpu.memory_space<vmem>>) attributes {dimension_semantics = [#tpu.dimension_semantics<parallel>, #tpu.dimension_semantics<parallel>], iteration_bounds = array<i64: 2, 2>, scalar_prefetch = 0 : i64, scratch_operands = 0 : i64, tpu.core_type = #tpu.core_type<tc>, window_params = [{transform_indices = @transform_0, window_bounds = array<i64: 1, 1, 40, 12>}, {transform_indices = @transform_1, window_bounds = array<i64: 1, 1, 32, 12>}, {pipeline_mode = #tpu.pipeline_mode<synchronous>, transform_indices = @transform_2, window_bounds = array<i64: 3, 12, 32>}, {pipeline_mode = #tpu.pipeline_mode<synchronous>, transform_indices = @transform_3, window_bounds = array<i64: 1, 32>}, {pipeline_mode = #tpu.pipeline_mode<synchronous>, transform_indices = @transform_4, window_bounds = array<i64: 1, 32>}, {transform_indices = @transform_5, window_bounds = array<i64: 1, 32, 32>}]} {
    %c0 = arith.constant 0 : index
    %c0_0 = arith.constant 0 : index
    %c0_1 = arith.constant 0 : index
    %c0_2 = arith.constant 0 : index
    %0 = vector.load %arg2[%c0, %c0_0, %c0_1, %c0_2] : memref<1x1x40x12xbf16, #tpu.memory_space<vmem>>, vector<1x1x32x12xbf16>
    %1 = vector.shape_cast %0 : vector<1x1x32x12xbf16> to vector<32x12xbf16>
    %c0_3 = arith.constant 0 : index
    %c0_4 = arith.constant 0 : index
    %c0_5 = arith.constant 0 : index
    %2 = vector.load %arg4[%c0_3, %c0_4, %c0_5] : memref<3x12x32xbf16, #tpu.memory_space<vmem>>, vector<1x12x32xbf16>
    %3 = vector.shape_cast %2 : vector<1x12x32xbf16> to vector<12x32xbf16>
    %cst = arith.constant dense<0.000000e+00> : vector<32x32xf32>
    %4 = tpu.matmul %1, %3, %cst {dimension_numbers = #tpu.dot_dimension_numbers<[1], [0], [0], [1], [0, 0, 1, 1], [], []>} : vector<32x12xbf16>, vector<12x32xbf16>, vector<32x32xf32> -> vector<32x32xf32>
    %c0_6 = arith.constant 0 : index
    %c0_7 = arith.constant 0 : index
    %c0_8 = arith.constant 0 : index
    %c0_9 = arith.constant 0 : index
    %5 = vector.load %arg3[%c0_6, %c0_7, %c0_8, %c0_9] : memref<1x1x32x12xbf16, #tpu.memory_space<vmem>>, vector<1x1x32x12xbf16>
    %6 = vector.shape_cast %5 : vector<1x1x32x12xbf16> to vector<32x12xbf16>
    %c1 = arith.constant 1 : index
    %c0_10 = arith.constant 0 : index
    %c0_11 = arith.constant 0 : index
    %7 = vector.load %arg4[%c1, %c0_10, %c0_11] : memref<3x12x32xbf16, #tpu.memory_space<vmem>>, vector<1x12x32xbf16>
    %8 = vector.shape_cast %7 : vector<1x12x32xbf16> to vector<12x32xbf16>
    %cst_12 = arith.constant dense<0.000000e+00> : vector<32x32xf32>
    %9 = tpu.matmul %6, %8, %cst_12 {dimension_numbers = #tpu.dot_dimension_numbers<[1], [0], [0], [1], [0, 0, 1, 1], [], []>} : vector<32x12xbf16>, vector<12x32xbf16>, vector<32x32xf32> -> vector<32x32xf32>
    %10 = arith.addf %4, %9 : vector<32x32xf32>
    %c0_13 = arith.constant 0 : index
    %c0_14 = arith.constant 0 : index
    %c8 = arith.constant 8 : index
    %c0_15 = arith.constant 0 : index
    %11 = vector.load %arg2[%c0_13, %c0_14, %c8, %c0_15] : memref<1x1x40x12xbf16, #tpu.memory_space<vmem>>, vector<1x1x32x12xbf16>
    %12 = vector.shape_cast %11 : vector<1x1x32x12xbf16> to vector<32x12xbf16>
    %c2 = arith.constant 2 : index
    %c0_16 = arith.constant 0 : index
    %c0_17 = arith.constant 0 : index
    %13 = vector.load %arg4[%c2, %c0_16, %c0_17] : memref<3x12x32xbf16, #tpu.memory_space<vmem>>, vector<1x12x32xbf16>
    %14 = vector.shape_cast %13 : vector<1x12x32xbf16> to vector<12x32xbf16>
    %cst_18 = arith.constant dense<0.000000e+00> : vector<32x32xf32>
    %15 = tpu.matmul %12, %14, %cst_18 {dimension_numbers = #tpu.dot_dimension_numbers<[1], [0], [0], [1], [0, 0, 1, 1], [], []>} : vector<32x12xbf16>, vector<12x32xbf16>, vector<32x32xf32> -> vector<32x32xf32>
    %16 = arith.addf %10, %15 : vector<32x32xf32>
    %c0_19 = arith.constant 0 : index
    %c0_20 = arith.constant 0 : index
    %17 = vector.load %arg5[%c0_19, %c0_20] : memref<1x32xf32, #tpu.memory_space<vmem>>, vector<1x32xf32>
    %18 = vector.broadcast %17 : vector<1x32xf32> to vector<32x32xf32>
    %19 = arith.mulf %16, %18 : vector<32x32xf32>
    %c0_21 = arith.constant 0 : index
    %c0_22 = arith.constant 0 : index
    %20 = vector.load %arg6[%c0_21, %c0_22] : memref<1x32xf32, #tpu.memory_space<vmem>>, vector<1x32xf32>
    %21 = vector.broadcast %20 : vector<1x32xf32> to vector<32x32xf32>
    %22 = arith.addf %19, %21 : vector<32x32xf32>
    %23 = arith.truncf %22 : vector<32x32xf32> to vector<32x32xbf16>
    %c0_23 = arith.constant 0 : index
    %c0_24 = arith.constant 0 : index
    %c0_25 = arith.constant 0 : index
    %24 = vector.load %arg7[%c0_23, %c0_24, %c0_25] : memref<1x32x32xbf16, #tpu.memory_space<vmem>>, vector<1x32x32xbf16>
    %25 = vector.shape_cast %24 : vector<1x32x32xbf16> to vector<32x32xbf16>
    %26 = vector.shape_cast %23 : vector<32x32xbf16> to vector<1x32x32xbf16>
    tpu.vector_store %arg7[%c0_23, %c0_24, %c0_25], %26 {strides = array<i32>} : memref<1x32x32xbf16, #tpu.memory_space<vmem>>, vector<1x32x32xbf16>,
    return
  }
  func.func @transform_0(%arg0: i32, %arg1: i32) -> (i32, i32, i32, i32) {
    %c0_i32 = arith.constant 0 : i32
    %c0_i32_0 = arith.constant 0 : i32
    %c0_i32_1 = arith.constant 0 : i32
    return %arg0, %arg1, %c0_i32, %c0_i32_0 : i32, i32, i32, i32
  }
  func.func @transform_1(%arg0: i32, %arg1: i32) -> (i32, i32, i32, i32) {
    %c0_i32 = arith.constant 0 : i32
    %c0_i32_0 = arith.constant 0 : i32
    %c0_i32_1 = arith.constant 0 : i32
    return %arg0, %arg1, %c0_i32, %c0_i32_0 : i32, i32, i32, i32
  }
  func.func @transform_2(%arg0: i32, %arg1: i32) -> (i32, i32, i32) {
    %c0_i32 = arith.constant 0 : i32
    %c0_i32_0 = arith.constant 0 : i32
    %c0_i32_1 = arith.constant 0 : i32
    %c0_i32_2 = arith.constant 0 : i32
    return %c0_i32, %c0_i32_0, %c0_i32_1 : i32, i32, i32
  }
  func.func @transform_3(%arg0: i32, %arg1: i32) -> (i32, i32) {
    %c0_i32 = arith.constant 0 : i32
    %c0_i32_0 = arith.constant 0 : i32
    %c0_i32_1 = arith.constant 0 : i32
    return %c0_i32, %c0_i32_0 : i32, i32
  }
  func.func @transform_4(%arg0: i32, %arg1: i32) -> (i32, i32) {
    %c0_i32 = arith.constant 0 : i32
    %c0_i32_0 = arith.constant 0 : i32
    %c0_i32_1 = arith.constant 0 : i32
    return %c0_i32, %c0_i32_0 : i32, i32
  }
  func.func @transform_5(%arg0: i32, %arg1: i32) -> (i32, i32, i32) {
    %c0_i32 = arith.constant 0 : i32
    %c0_i32_0 = arith.constant 0 : i32
    return %arg0, %arg1, %c0_i32 : i32, i32, i32
  }
}

</mosaic_0001>

<llo_original>
// kernel: downsample_forward.1
$region0: #{downsample_forward.1}
  #allocation0 [shape = 'u32[]', space=smem, size = 0x4, offset = 0x4, fixed_abs, tag = 'smem constant byte address 0x4 - core index']
  #allocation1 [shape = 'u32[72,128]{1,0:T(1,128)}', space=vmem, size = 0x9000, scoped, tag = 'internal scratch']
  %s0 = inlined_call_operand.vmem [shape: bf16[2,2,40,12], index: 0, kind: input, shape index: {}]
  %s1 = inlined_call_operand.vmem [shape: bf16[2,2,32,12], index: 1, kind: input, shape index: {}]
  %s2 = inlined_call_operand.vmem [shape: bf16[3,12,32], index: 2, kind: input, shape index: {}]
  %s3 = inlined_call_operand.vmem [shape: f32[1,32], index: 3, kind: input, shape index: {}]
  %s4 = inlined_call_operand.vmem [shape: f32[1,32], index: 4, kind: input, shape index: {}]
  %s5 = inlined_call_operand.hbm [shape: bf16[2,64,32], index: 5, kind: output, shape index: {}]
  %s6 = sld [smem:[#allocation0]]
  $region53: #{downsample_forward.1} parent=0
    _
  %s8 = ssub.s32 1, %s6
  %s9 = scalar_select 0, %s8, %s6
  $region1: #{downsample_forward.1} parent=0
    #allocation2 [shape = 'u8[16384]{0}', space=vmem, size = 0x4000, scoped, tag = 'output window, operand 0']
    #allocation3 [shape = 's32[2]{0}', space=sflag, size = 0x8, scoped, tag = 'scoped memory for downsample_forward.1']
    %10 = vsyncpa [#allocation3], 0
    %s11 = scalar_lea.sflag [#allocation3], 1
    %12 = vsyncpa %s11, 0
    loop: start=0, step=1, limit=6
    $region2: #{downsample_forward.1} parent=1 // loop_pre_header
      _
    $region3: #{downsample_forward.1} parent=1 // loop_header
      %s14 = sphi 0, %s18
      %p15 = scmp.ge.s32.totalorder %s14, 6
      %s21 = sphi 0, %s33
      %s22 = sphi 0, %s29
      %s23 = sphi 0, %s21
      %s24 = sphi 0, %s22
      %s25 = sphi 0, %s23
      %s26 = sphi 0, %s24
      %s38 = sphi 0, %s40
      %s41 = sphi 0, %s38
      %s42 = sphi 0, %s41
      %s58 = sphi 0, %s42
      %s66 = sphi 0, %s68
      %s69 = sphi 0, %s66
      %s70 = sphi 0, %s69
      %s86 = sphi 0, %s70
      %s90 = sphi 0, %s90
      %s92 = sphi 0, %s90
      %s93 = sphi 0, %s92
      %s107 = sphi 0, %s93
      %s111 = sphi 0, %s111
      %s113 = sphi 0, %s111
      %s114 = sphi 0, %s113
      %s128 = sphi 0, %s114
      %s132 = sphi 0, %s132
      %s134 = sphi 0, %s132
      %s135 = sphi 0, %s134
      %s149 = sphi 0, %s135
      %s157 = sphi 0, %s159
      %s160 = sphi 0, %s157
      %s161 = sphi 0, %s160
      %s177 = sphi 0, %s161
    $region4: #{downsample_forward.1} parent=1 // loop_header_branch
      %17 = sbr.rel (%p15) target = $region8
    $region5: #{downsample_forward.1} parent=1 // loop_body
      %s19 = ssub.s32 %s14, 1
      %s20 = ssub.s32 %s14, 2
      %s27 = sadd.s32 1, %s22
      %p28 = scmp.ge.s32.totalorder %s27, 2
      %s29 = scalar_select %p28, 0, %s27
      %s30 = sadd.s32 1, %s21
      %s31 = scalar_select %p28, %s30, %s21
      %p32 = scmp.ge.s32.totalorder %s31, 2
      %s33 = scalar_select %p32, 0, %s31
      %s34 = ssub.s32 %s21, %s33
      %s35 = ssub.s32 %s22, %s29
      %s36 = sor.u32 %s34, %s35
      %p37 = scmp.eq.s32.totalorder %s36, 0
      %s39 = sadd.s32 %s38, 1
      %s40 = scalar_select %p37, %s38, %s39
      %p43 = pneg %p37
      %p44 = scmp.eq.s32.totalorder %s14, 3
      %p45 = por %p43, %p44
      %p46 = scmp.ne.s32.totalorder %s38, %s41
      %p47 = scmp.eq.s32.totalorder %s14, 0
      %p48 = por %p46, %p47
      %p49 = scmp.ne.s32.totalorder %s38, %s41
      %p50 = scmp.eq.s32.totalorder %s19, 3
      %p51 = por %p49, %p50
      %p52 = scmp.ne.s32.totalorder %s41, %s42
      %p53 = scmp.eq.s32.totalorder %s19, 0
      %p54 = por %p52, %p53
      %p55 = scmp.ne.s32.totalorder %s41, %s42
      %p56 = scmp.eq.s32.totalorder %s20, 3
      %p57 = por %p55, %p56
      %p59 = scmp.ne.s32.totalorder %s42, %s58
      %p60 = scmp.eq.s32.totalorder %s20, 0
      %p61 = por %p59, %p60
      %s62 = ssub.s32 %s21, %s33
      %s63 = ssub.s32 %s22, %s29
      %s64 = sor.u32 %s62, %s63
      %p65 = scmp.eq.s32.totalorder %s64, 0
      %s67 = sadd.s32 %s66, 1
      %s68 = scalar_select %p65, %s66, %s67
      %p71 = pneg %p65
      %p72 = scmp.eq.s32.totalorder %s14, 3
      %p73 = por %p71, %p72
      %p74 = scmp.ne.s32.totalorder %s66, %s69
      %p75 = scmp.eq.s32.totalorder %s14, 0
      %p76 = por %p74, %p75
      %p77 = scmp.ne.s32.totalorder %s66, %s69
      %p78 = scmp.eq.s32.totalorder %s19, 3
      %p79 = por %p77, %p78
      %p80 = scmp.ne.s32.totalorder %s69, %s70
      %p81 = scmp.eq.s32.totalorder %s19, 0
      %p82 = por %p80, %p81
      %p83 = scmp.ne.s32.totalorder %s69, %s70
      %p84 = scmp.eq.s32.totalorder %s20, 3
      %p85 = por %p83, %p84
      %p87 = scmp.ne.s32.totalorder %s70, %s86
      %p88 = scmp.eq.s32.totalorder %s20, 0
      %p89 = por %p87, %p88
      %s91 = sadd.s32 %s90, 1
      %p94 = scmp.eq.s32.totalorder %s14, 3
      %p95 = scmp.ne.s32.totalorder %s90, %s92
      %p96 = scmp.eq.s32.totalorder %s14, 0
      %p97 = por %p95, %p96
      %p98 = scmp.ne.s32.totalorder %s90, %s92
      %p99 = scmp.eq.s32.totalorder %s19, 3
      %p100 = por %p98, %p99
      %p101 = scmp.ne.s32.totalorder %s92, %s93
      %p102 = scmp.eq.s32.totalorder %s19, 0
      %p103 = por %p101, %p102
      %p104 = scmp.ne.s32.totalorder %s92, %s93
      %p105 = scmp.eq.s32.totalorder %s20, 3
      %p106 = por %p104, %p105
      %p108 = scmp.ne.s32.totalorder %s93, %s107
      %p109 = scmp.eq.s32.totalorder %s20, 0
      %p110 = por %p108, %p109
      %s112 = sadd.s32 %s111, 1
      %p115 = scmp.eq.s32.totalorder %s14, 3
      %p116 = scmp.ne.s32.totalorder %s111, %s113
      %p117 = scmp.eq.s32.totalorder %s14, 0
      %p118 = por %p116, %p117
      %p119 = scmp.ne.s32.totalorder %s111, %s113
      %p120 = scmp.eq.s32.totalorder %s19, 3
      %p121 = por %p119, %p120
      %p122 = scmp.ne.s32.totalorder %s113, %s114
      %p123 = scmp.eq.s32.totalorder %s19, 0
      %p124 = por %p122, %p123
      %p125 = scmp.ne.s32.totalorder %s113, %s114
      %p126 = scmp.eq.s32.totalorder %s20, 3
      %p127 = por %p125, %p126
      %p129 = scmp.ne.s32.totalorder %s114, %s128
      %p130 = scmp.eq.s32.totalorder %s20, 0
      %p131 = por %p129, %p130
      %s133 = sadd.s32 %s132, 1
      %p136 = scmp.eq.s32.totalorder %s14, 3
      %p137 = scmp.ne.s32.totalorder %s132, %s134
      %p138 = scmp.eq.s32.totalorder %s14, 0
      %p139 = por %p137, %p138
      %p140 = scmp.ne.s32.totalorder %s132, %s134
      %p141 = scmp.eq.s32.totalorder %s19, 3
      %p142 = por %p140, %p141
      %p143 = scmp.ne.s32.totalorder %s134, %s135
      %p144 = scmp.eq.s32.totalorder %s19, 0
      %p145 = por %p143, %p144
      %p146 = scmp.ne.s32.totalorder %s134, %s135
      %p147 = scmp.eq.s32.totalorder %s20, 3
      %p148 = por %p146, %p147
      %p150 = scmp.ne.s32.totalorder %s135, %s149
      %p151 = scmp.eq.s32.totalorder %s20, 0
      %p152 = por %p150, %p151
      %s153 = ssub.s32 %s21, %s33
      %s154 = ssub.s32 %s22, %s29
      %s155 = sor.u32 %s153, %s154
      %p156 = scmp.eq.s32.totalorder %s155, 0
      %s158 = sadd.s32 %s157, 1
      %s159 = scalar_select %p156, %s157, %s158
      %p162 = pneg %p156
      %p163 = scmp.eq.s32.totalorder %s14, 3
      %p164 = por %p162, %p163
      %p165 = scmp.ne.s32.totalorder %s157, %s160
      %p166 = scmp.eq.s32.totalorder %s14, 0
      %p167 = por %p165, %p166
      %p168 = scmp.ne.s32.totalorder %s157, %s160
      %p169 = scmp.eq.s32.totalorder %s19, 3
      %p170 = por %p168, %p169
      %p171 = scmp.ne.s32.totalorder %s160, %s161
      %p172 = scmp.eq.s32.totalorder %s19, 0
      %p173 = por %p171, %p172
      %p174 = scmp.ne.s32.totalorder %s160, %s161
      %p175 = scmp.eq.s32.totalorder %s20, 3
      %p176 = por %p174, %p175
      %p178 = scmp.ne.s32.totalorder %s161, %s177
      %p179 = scmp.eq.s32.totalorder %s20, 0
      %p180 = por %p178, %p179
      %p181 = scmp.le.s32.totalorder 1, %s14
      %p182 = scmp.lt.s32.totalorder %s14, 5
      %p183 = pnand %p181, %p182
      %p184 = pneg %p183
      // Predicated region
      $region9: #{downsample_forward.1} parent=5 // pred_check
        _
      $region10: #{downsample_forward.1} parent=5 // pred_check_branch
        %186 = sbr.rel (%p183) target = $region12
      $region11: #{downsample_forward.1} parent=5 // pred_region
        %s187 = ssub.s32 %s14, 1
        // Predicated region
        $region13: #{downsample_forward.1} parent=11 // pred_check
          %p188 = pneg %p103
        $region14: #{downsample_forward.1} parent=11 // pred_check_branch
          %190 = sbr.rel (%p188) target = $region16
        $region15: #{downsample_forward.1} parent=11 // pred_region
          _
        $region16: #{downsample_forward.1} parent=11 // pred_fallthru
          _
        // Predicated region
        $region17: #{downsample_forward.1} parent=11 // pred_check
          %p191 = pneg %p124
        $region18: #{downsample_forward.1} parent=11 // pred_check_branch
          %193 = sbr.rel (%p191) target = $region20
        $region19: #{downsample_forward.1} parent=11 // pred_region
          _
        $region20: #{downsample_forward.1} parent=11 // pred_fallthru
          _
        // Predicated region
        $region21: #{downsample_forward.1} parent=11 // pred_check
          %p194 = pneg %p145
        $region22: #{downsample_forward.1} parent=11 // pred_check_branch
          %196 = sbr.rel (%p194) target = $region24
        $region23: #{downsample_forward.1} parent=11 // pred_region
          _
        $region24: #{downsample_forward.1} parent=11 // pred_fallthru
          _
      $region12: #{downsample_forward.1} parent=5 // pred_fallthru
        _
      %p197 = scmp.lt.s32.totalorder %s14, 4
      // Predicated region
      $region25: #{downsample_forward.1} parent=5 // pred_check
        %p198 = pneg %p197
      $region26: #{downsample_forward.1} parent=5 // pred_check_branch
        %200 = sbr.rel (%p198) target = $region28
      $region27: #{downsample_forward.1} parent=5 // pred_region
        // Predicated region
        $region29: #{downsample_forward.1} parent=27 // pred_check
          %p201 = pneg %p48
        $region30: #{downsample_forward.1} parent=27 // pred_check_branch
          %203 = sbr.rel (%p201) target = $region32
        $region31: #{downsample_forward.1} parent=27 // pred_region
          %p204 = scmp.lt.s32.totalorder %s21, 1
          %s205 = scalar_select %p204, %s21, 1
          %p206 = scmp.lt.s32.totalorder %s22, 1
          %s207 = scalar_select %p206, %s22, 1
          %s208 = smul.addr %s207, 5
          %s209 = smul.addr %s205, 10
          %s210 = sadd.s32 %s208, %s209
          %s211 = smul.addr %s210, 4
          %s212 = scalar_lea.vmem %s0, %s211
        $region32: #{downsample_forward.1} parent=27 // pred_fallthru
          _
        // Predicated region
        $region33: #{downsample_forward.1} parent=27 // pred_check
          %p213 = pneg %p76
        $region34: #{downsample_forward.1} parent=27 // pred_check_branch
          %215 = sbr.rel (%p213) target = $region36
        $region35: #{downsample_forward.1} parent=27 // pred_region
          %p216 = scmp.lt.s32.totalorder %s21, 1
          %s217 = scalar_select %p216, %s21, 1
          %p218 = scmp.lt.s32.totalorder %s22, 1
          %s219 = scalar_select %p218, %s22, 1
          %s220 = smul.addr %s219, 4
          %s221 = smul.addr %s217, 8
          %s222 = sadd.s32 %s220, %s221
          %s223 = smul.addr %s222, 4
          %s224 = scalar_lea.vmem %s1, %s223
        $region36: #{downsample_forward.1} parent=27 // pred_fallthru
          _
      $region28: #{downsample_forward.1} parent=5 // pred_fallthru
        _
      %p225 = scmp.le.s32.totalorder 1, %s14
      %p226 = scmp.lt.s32.totalorder %s14, 5
      %p227 = pnand %p225, %p226
      %p228 = pneg %p227
      // Predicated region
      $region37: #{downsample_forward.1} parent=5 // pred_check
        _
      $region38: #{downsample_forward.1} parent=5 // pred_check_branch
        %230 = sbr.rel (%p227) target = $region40
      $region39: #{downsample_forward.1} parent=5 // pred_region
        %s231 = ssub.s32 %s14, 1
        %p232 = scmp.lt.s32.totalorder %s23, 1
        %s233 = scalar_select %p232, %s23, 1
        %p234 = scmp.lt.s32.totalorder %s24, 1
        %s235 = scalar_select %p234, %s24, 1
        %s236 = smul.addr %s235, 5
        %s237 = smul.addr %s233, 10
        %s238 = sadd.s32 %s236, %s237
        %s239 = smul.addr %s238, 4
        %s240 = scalar_lea.vmem %s0, %s239
        %p241 = pneg %p54
        %p242 = pneg %p51
        %p243 = scmp.lt.s32.totalorder %s23, 1
        %s244 = scalar_select %p243, %s23, 1
        %p245 = scmp.lt.s32.totalorder %s24, 1
        %s246 = scalar_select %p245, %s24, 1
        %s247 = smul.addr %s246, 4
        %s248 = smul.addr %s244, 8
        %s249 = sadd.s32 %s247, %s248
        %s250 = smul.addr %s249, 4
        %s251 = scalar_lea.vmem %s1, %s250
        %p252 = pneg %p82
        %p253 = pneg %p79
        %p254 = pneg %p103
        %p255 = pneg %p100
        %p256 = pneg %p124
        %p257 = pneg %p121
        %p258 = pneg %p145
        %p259 = pneg %p142
        %p260 = pneg %p173
        %p261 = pneg %p170
        %s262 = sand.u32 %s160, 1
        %s263 = scalar_lea.sflag [#allocation3], %s262
        %s264 = sand.u32 %s160, 1
        %s265 = smul.addr %s264, 16
        %s266 = scalar_lea.vmem [#allocation2], %s265
        %p267 = scmp.lt.s32.totalorder %s23, 1
        %s268 = scalar_select %p267, %s23, 1
        %p269 = scmp.lt.s32.totalorder %s24, 1
        %s270 = scalar_select %p269, %s24, 1
        %s271 = smul.addr %s270, 5
        %s272 = smul.addr %s268, 10
        %s273 = sadd.s32 %s271, %s272
        %s274 = smul.addr %s273, 4
        %s275 = scalar_lea.vmem %s0, %s274
        %p276 = scmp.lt.s32.totalorder %s23, 1
        %s277 = scalar_select %p276, %s23, 1
        %p278 = scmp.lt.s32.totalorder %s24, 1
        %s279 = scalar_select %p278, %s24, 1
        %s280 = smul.addr %s279, 4
        %s281 = smul.addr %s277, 8
        %s282 = sadd.s32 %s280, %s281
        %s283 = smul.addr %s282, 4
        %s284 = scalar_lea.vmem %s1, %s283
        %s285 = smul.u32 4, %s24
        %v287 = vld [vmem:[%s275] sm:$0xf]
        %v288 = vld [vmem:[%s275 + $0x4] sm:$0xf]
        %v289 = vld [vmem:[%s275 + $0x8] sm:$0xf]
        %v290 = vld [vmem:[%s275 + $0xc] sm:$0xf]
        %v291 = vld [vmem:[%s2] sm:$0xf]
        %v292 = vld [vmem:[%s2 + $0x4] sm:$0x3]
        %v293 = vld [vmem:[%s284] sm:$0xf]
        %v294 = vld [vmem:[%s284 + $0x4] sm:$0xf]
        %v295 = vld [vmem:[%s284 + $0x8] sm:$0xf]
        %v296 = vld [vmem:[%s284 + $0xc] sm:$0xf]
        %s297 = scalar_lea.vmem %s2, 8
        %v298 = vld [vmem:[%s297] sm:$0xf]
        %v299 = vld [vmem:[%s297 + $0x4] sm:$0x3]
        %v304 = vunpack.c.l.b16 %v293
        %v305 = vunpack.c.l.b16 %v294
        %v306 = vunpack.c.l.b16 %v295
        %v307 = vunpack.c.l.b16 %v296
        %v308 = vpack.c.b16 %v305, %v304
        %v309 = vpack.c.b16 %v307, %v306
        %v312 = vunpack.c.l.b16 %v298
        %v313 = vunpack.c.l.b16 %v299
        %v314 = vpack.c.b16 %v313, %v312
        %vm315 = vcmask 97280
        %v317 = vsel %vm315, %v308, 0
        %v320 = vsel %vm315, %v309, 0
        %vm322 = vcmask 1045504
        %v324 = vsel %vm322, %v314, 0
        %326 = vmatpush.bf16.msra.mxu0 0
        %327 = vmatpush.bf16.msra.mxu0 0
        %328 = vmatpush.bf16.msra.mxu0 0
        %329 = vmatpush.bf16.msra.mxu0 0
        %330 = vmatpush.bf16.msra.mxu0 0
        %331 = vmatpush.bf16.msra.mxu0 0
        %332 = vmatpush.bf16.msra.mxu0 0
        %333 = vmatpush.bf16.msra.mxu0 %v324
        %334 = vmatmul.bf16.gmra.mxu0 %v317
        %v335 = vpop.f32.mrf.mxu0
        %v336 = vadd.f32 0.0, %v335
        %v337 = vpop.f32.mrf.mxu0
        %v338 = vadd.f32 0.0, %v337
        %339 = vmatmul.bf16.gmra.mxu0 %v320
        %v340 = vpop.f32.mrf.mxu0
        %v341 = vadd.f32 0.0, %v340
        %v342 = vpop.f32.mrf.mxu0
        %v343 = vadd.f32 0.0, %v342
        %344 = vdwg.mxu0
        %v349 = vunpack.c.l.b16 %v287
        %v350 = vunpack.c.l.b16 %v288
        %v351 = vunpack.c.l.b16 %v289
        %v352 = vunpack.c.l.b16 %v290
        %v353 = vpack.c.b16 %v350, %v349
        %v354 = vpack.c.b16 %v352, %v351
        %v357 = vunpack.c.l.b16 %v291
        %v358 = vunpack.c.l.b16 %v292
        %v359 = vpack.c.b16 %v358, %v357
        %v361 = vsel %vm315, %v353, 0
        %v364 = vsel %vm315, %v354, 0
        %v367 = vsel %vm322, %v359, 0
        %369 = vmatpush.bf16.msra.mxu0 0
        %370 = vmatpush.bf16.msra.mxu0 0
        %371 = vmatpush.bf16.msra.mxu0 0
        %372 = vmatpush.bf16.msra.mxu0 0
        %373 = vmatpush.bf16.msra.mxu0 0
        %374 = vmatpush.bf16.msra.mxu0 0
        %375 = vmatpush.bf16.msra.mxu0 0
        %376 = vmatpush.bf16.msra.mxu0 %v367
        %377 = vmatmul.bf16.gmra.mxu0 %v361
        %v378 = vpop.f32.mrf.mxu0
        %v379 = vadd.f32 %v336, %v378
        %v380 = vpop.f32.mrf.mxu0
        %v381 = vadd.f32 %v338, %v380
        %382 = vmatmul.bf16.gmra.mxu0 %v364
        %v383 = vpop.f32.mrf.mxu0
        %v384 = vadd.f32 %v341, %v383
        %v385 = vpop.f32.mrf.mxu0
        %v386 = vadd.f32 %v343, %v385
        %387 = vdwg.mxu0
        %v388 = vld [vmem:[%s275 + $0x4] sm:$0xf]
        %v389 = vld [vmem:[%s275 + $0x8] sm:$0xf]
        %v390 = vld [vmem:[%s275 + $0xc] sm:$0xf]
        %v391 = vld [vmem:[%s275 + $0x10] sm:$0xf]
        %s392 = scalar_lea.vmem %s2, 16
        %v393 = vld [vmem:[%s392] sm:$0xf]
        %v394 = vld [vmem:[%s392 + $0x4] sm:$0x3]
        %v399 = vunpack.c.l.b16 %v388
        %v400 = vunpack.c.l.b16 %v389
        %v401 = vunpack.c.l.b16 %v390
        %v402 = vunpack.c.l.b16 %v391
        %v403 = vpack.c.b16 %v400, %v399
        %v404 = vpack.c.b16 %v402, %v401
        %v407 = vunpack.c.l.b16 %v393
        %v408 = vunpack.c.l.b16 %v394
        %v409 = vpack.c.b16 %v408, %v407
        %v411 = vsel %vm315, %v403, 0
        %v414 = vsel %vm315, %v404, 0
        %v417 = vsel %vm322, %v409, 0
        %419 = vmatpush.bf16.msra.mxu0 0
        %420 = vmatpush.bf16.msra.mxu0 0
        %421 = vmatpush.bf16.msra.mxu0 0
        %422 = vmatpush.bf16.msra.mxu0 0
        %423 = vmatpush.bf16.msra.mxu0 0
        %424 = vmatpush.bf16.msra.mxu0 0
        %425 = vmatpush.bf16.msra.mxu0 0
        %426 = vmatpush.bf16.msra.mxu0 %v417
        %427 = vmatmul.bf16.gmra.mxu0 %v411
        %v428 = vpop.f32.mrf.mxu0
        %v429 = vadd.f32 0.0, %v428
        %v430 = vpop.f32.mrf.mxu0
        %v431 = vadd.f32 0.0, %v430
        %432 = vmatmul.bf16.gmra.mxu0 %v414
        %v433 = vpop.f32.mrf.mxu0
        %v434 = vadd.f32 0.0, %v433
        %v435 = vpop.f32.mrf.mxu0
        %v436 = vadd.f32 0.0, %v435
        %437 = vdwg.mxu0
        %v438 = vadd.f32 %v379, %v429
        %v439 = vadd.f32 %v381, %v431
        %v440 = vadd.f32 %v384, %v434
        %v441 = vadd.f32 %v386, %v436
        %v442 = vld [vmem:[%s3] sm:$0x1]
        %v444 = vperm.slane %v442, 0
        %v446 = vmul.f32 %v438, %v444
        %v447 = vmul.f32 %v439, %v444
        %v448 = vmul.f32 %v440, %v444
        %v449 = vmul.f32 %v441, %v444
        %v450 = vld [vmem:[%s4] sm:$0x1]
        %v452 = vperm.slane %v450, 0
        %v454 = vadd.f32 %v446, %v452
        %v455 = vadd.f32 %v447, %v452
        %v456 = vadd.f32 %v448, %v452
        %v457 = vadd.f32 %v449, %v452
        %v458 = vpack.c.bf16 %v454, %v454
        %v459 = vpack.c.bf16 %v455, %v455
        %v460 = vpack.c.bf16 %v456, %v456
        %v461 = vpack.c.bf16 %v457, %v457
        %vm462 = vcmask 257024
        %463 = vst.msk [vmem:[%s266] sm:$0xf] %vm462, %v458
        %464 = vst.msk [vmem:[%s266 + $0x4] sm:$0xf] %vm462, %v459
        %465 = vst.msk [vmem:[%s266 + $0x8] sm:$0xf] %vm462, %v460
        %466 = vst.msk [vmem:[%s266 + $0xc] sm:$0xf] %vm462, %v461
        %s467 = sand.u32 %s160, 1
        %s468 = scalar_lea.sflag [#allocation3], %s467
        %s469 = sand.u32 %s160, 1
        %s470 = smul.addr %s469, 16
        %s471 = scalar_lea.vmem [#allocation2], %s470
        // Predicated region
        $region41: #{downsample_forward.1} parent=39 // pred_check
          %p472 = pneg %p170
        $region42: #{downsample_forward.1} parent=39 // pred_check_branch
          %474 = sbr.rel (%p472) target = $region44
        $region43: #{downsample_forward.1} parent=39 // pred_region
          %s475 = smul.u32 4, %s24
          %477 = vsyncadd %s468, 0
          %s478 = smul.addr %s23, 8
          %s479 = sadd.s32 %s475, %s478
          %s480 = smul.addr %s479, 4
          %s481 = scalar_lea.hbm %s5, %s480
          %s482 = sshll.u32 %s471, 4
          %s483 = int_to_ptr.vmem [resolvable:$true] %s482
          %s484 = sshll.u32 %s481, 4
          %s485 = int_to_ptr.hbm [resolvable:$true] %s484
          %490 = dma.vmem_to_hbm [thread:$0]  %s483, 256, %s485, %s468, 64, 64, 4
        $region44: #{downsample_forward.1} parent=39 // pred_fallthru
          _
      $region40: #{downsample_forward.1} parent=5 // pred_fallthru
        _
      %p491 = scmp.le.s32.totalorder 2, %s14
      // Predicated region
      $region45: #{downsample_forward.1} parent=5 // pred_check
        %p492 = pneg %p491
      $region46: #{downsample_forward.1} parent=5 // pred_check_branch
        %494 = sbr.rel (%p492) target = $region48
      $region47: #{downsample_forward.1} parent=5 // pred_region
        %s495 = ssub.s32 %s14, 2
        // Predicated region
        $region49: #{downsample_forward.1} parent=47 // pred_check
          %p496 = pneg %p176
        $region50: #{downsample_forward.1} parent=47 // pred_check_branch
          %498 = sbr.rel (%p496) target = $region52
        $region51: #{downsample_forward.1} parent=47 // pred_region
          %s499 = sand.u32 %s161, 1
          %s500 = scalar_lea.sflag [#allocation3], %s499
          %s501 = sand.u32 %s161, 1
          %s502 = smul.addr %s501, 16
          %s503 = scalar_lea.vmem [#allocation2], %s502
          %505 = dma.done %s500, 256
        $region52: #{downsample_forward.1} parent=47 // pred_fallthru
          _
      $region48: #{downsample_forward.1} parent=5 // pred_fallthru
        _
    $region6: #{downsample_forward.1} parent=1 // loop_footer
      %s18 = sadd.s32 1, %s14
    $region7: #{downsample_forward.1} parent=1 // loop_footer_branch
      %13 = sbr.rel target = $region3
    $region8: #{downsample_forward.1} parent=1 // loop_exit
      _
    %506 = vsyncpa [#allocation3], 1
    %s507 = scalar_lea.sflag [#allocation3], 1
    %508 = vsyncpa %s507, 1

</llo_original>
